<compile_context>
chip_gen: v6e
topology: v6e:2x2x1
jax: 0.10.0
libtpu: 0.0.40
codegen_flags: <defaults>
</compile_context>

<pallas_src>
import jax
import jax.numpy as jnp
from jax.experimental import pallas as pl
from jax.experimental.pallas import tpu as pltpu


def _cdiv(a, b):
    return -(-a // b)


def _round_up(a, b):
    return _cdiv(a, b) * b


def _hedgehog_fold_kernel(x_ref, w_ref, b_ref, o_ref):
    # z = x @ [W^T | -W^T] + [b | -b]   (possibly lane-packed / block-diagonal)
    z = jnp.dot(x_ref[...], w_ref[...], preferred_element_type=jnp.float32)
    z = z + b_ref[...].astype(jnp.float32)
    # Single unmasked, lane-dense store of the whole output tile.
    o_ref[...] = jnp.exp(z).astype(o_ref.dtype)


def _hedgehog_recip_kernel(x_ref, w_ref, b_ref, o_ref):
    # Used when D % 128 == 0 (slice stores are lane-aligned): exp once,
    # second half is an exact reciprocal -> half the EUP exp pushes.
    D = w_ref.shape[1]
    y = jnp.dot(x_ref[...], w_ref[...], preferred_element_type=jnp.float32)
    y = y + b_ref[...].astype(jnp.float32)
    e = jnp.exp(y)
    o_ref[:, :D] = e.astype(o_ref.dtype)
    o_ref[:, D:] = pl.reciprocal(e, approx=False).astype(o_ref.dtype)


def hedgehog_feature_map(x, weight, bias, *, tm=2048,
                         vmem_tile_budget_bytes=16 << 20):
    """x: (..., D); weight: (D, D) PyTorch convention (out, in); bias: (D,)."""
    weight = jnp.asarray(weight)
    bias = jnp.asarray(bias)
    D = weight.shape[0]
    lead = x.shape[:-1]
    xf = x.reshape(-1, D)
    M = xf.shape[0]

    use_recip = (D % 128 == 0)

    if use_recip:
        # Lane-aligned slice stores; exp + exact reciprocal path.
        P = 1
        Din, Dout = D, 2 * D
        w_in = weight.T                                   # (D, D)
        b_in = bias.reshape(1, D)
        Mp = M
        xp = xf
        kern = _hedgehog_recip_kernel
        n_transcendental = Mp * Din
    else:
        # Fold sign + concat into the weight: W2 = [W^T | -W^T], b2 = [b | -b].
        wt = weight.T                                     # (D, D)
        wcat = jnp.concatenate([wt, -wt], axis=1)         # (D, 2D)
        bcat = jnp.concatenate([bias, -bias])             # (2D,)

        # Lane packing: P rows per packed row so input lanes = 128 exactly.
        P = 1
        if D < 128 and 128 % D == 0 and M % (128 // D) == 0:
            P = 128 // D
        Din, Dout = P * D, 2 * P * D

        if P > 1:
            # Block-diagonal weight: g-th diagonal block is [W^T | -W^T].
            w_in = jnp.kron(jnp.eye(P, dtype=wcat.dtype), wcat)   # (P*D, 2*P*D)
            b_in = jnp.tile(bcat, P).reshape(1, Dout)
        else:
            w_in = wcat
            b_in = bcat.reshape(1, Dout)

        Mp = M // P
        xp = xf.reshape(Mp, Din)      # row-major repack, free
        kern = _hedgehog_fold_kernel
        n_transcendental = Mp * Dout

    # ---- Row-tile selection: big tiles within a VMEM budget, >=2 steps for v7x.
    itemsize = jnp.dtype(x.dtype).itemsize
    bytes_per_row = 2 * (Din + Dout) * itemsize           # double-buffered in+out
    tm_cap = max(8, (vmem_tile_budget_bytes // bytes_per_row) // 8 * 8)
    tm_eff = min(tm, tm_cap)
    if Mp <= tm_eff:
        if Mp > 256:
            # Enough work to share: split into (at least) 2 parallel grid steps
            # so both v7x TensorCores run.
            tm_eff = max(8, _round_up(_cdiv(Mp, 2), 8))
        elif Mp >= 8:
            tm_eff = _round_up(Mp, 8)
        else:
            tm_eff = Mp            # block equals full first dim (allowed)
    grid = (_cdiv(Mp, tm_eff),)    # no padding: Pallas masks the boundary block

    est_vmem = (2 * tm_eff * (Din + Dout) * itemsize
                + w_in.size * w_in.dtype.itemsize
                + b_in.size * b_in.dtype.itemsize)
    vmem_limit = int(min(48 << 20, max(16 << 20, 2 * est_vmem + (2 << 20))))

    cost = pl.CostEstimate(
        flops=2 * Mp * Din * w_in.shape[1],
        transcendentals=n_transcendental,
        bytes_accessed=(Mp * Din * itemsize              # read x
                        + Mp * Dout * itemsize           # write out
                        + w_in.size * w_in.dtype.itemsize
                        + b_in.size * b_in.dtype.itemsize),
    )

    out = pl.pallas_call(
        kern,
        out_shape=jax.ShapeDtypeStruct((Mp, Dout), x.dtype),
        grid_spec=pltpu.PrefetchScalarGridSpec(
            num_scalar_prefetch=0,
            grid=grid,
            in_specs=[
                pl.BlockSpec((tm_eff, Din), lambda i: (i, 0)),   # x row tile
                pl.BlockSpec(w_in.shape, lambda i: (0, 0)),      # weight, VMEM-resident
                pl.BlockSpec(b_in.shape, lambda i: (0, 0)),      # bias, VMEM-resident
            ],
            out_specs=pl.BlockSpec((tm_eff, Dout), lambda i: (i, 0)),
        ),
        compiler_params=pltpu.CompilerParams(
            dimension_semantics=("parallel",),
            vmem_limit_bytes=vmem_limit,
        ),
        cost_estimate=cost,
    )(xp, w_in, b_in)

    # (M/P, 2*P*D) reinterprets row-major to (M, 2D) -> (*lead, 2D), free.
    return out.reshape(*lead, 2 * D)


def _bf16_representable(a):
    # Makes random test inputs exactly bf16-representable so MXU bf16 passes
    # are exact and the kernel matches the plain-JAX reference tightly.
    return a.astype(jnp.bfloat16).astype(jnp.float32)


if __name__ == "__main__":
    head_dim = 32
    batch, seq = 2, 8

    key = jax.random.PRNGKey(0)
    x = jax.random.normal(key, (batch, seq, head_dim), dtype=jnp.float32)

    # Deterministic params per module __init__: eye weight, zero bias.
    weight = jnp.eye(head_dim, dtype=jnp.float32)       # nn.init.eye_
    bias = jnp.zeros((head_dim,), dtype=jnp.float32)    # nn.init.zeros_

    out = jax.block_until_ready(hedgehog_feature_map(x, weight, bias))
    y_ref = x @ weight.T + bias
    ref = jnp.concatenate([jnp.exp(y_ref), jnp.exp(-y_ref)], axis=-1)
    assert out.shape == (batch, seq, 2 * head_dim)
    assert jnp.allclose(out, ref, rtol=1e-5, atol=1e-5)

    # Packed, multi-step, masked-boundary path (M=3000, P=4, grid of 2).
    x2 = _bf16_representable(
        jax.random.normal(jax.random.PRNGKey(1), (3, 1000, head_dim), jnp.float32))
    w2 = _bf16_representable(
        jax.random.normal(jax.random.PRNGKey(2), (head_dim, head_dim), jnp.float32) * 0.1)
    b2 = _bf16_representable(
        jax.random.normal(jax.random.PRNGKey(3), (head_dim,), jnp.float32) * 0.1)
    out2 = jax.block_until_ready(hedgehog_feature_map(x2, w2, b2))
    y2 = x2 @ w2.T + b2
    ref2 = jnp.concatenate([jnp.exp(y2), jnp.exp(-y2)], axis=-1)
    assert out2.shape == (3, 1000, 2 * head_dim)
    assert jnp.allclose(out2, ref2, rtol=1e-4, atol=1e-4)

    # Non-packable fall-back (M % P != 0) with a ragged boundary block.
    x3 = _bf16_representable(
        jax.random.normal(jax.random.PRNGKey(4), (5, 7, head_dim), jnp.float32))
    out3 = jax.block_until_ready(hedgehog_feature_map(x3, w2, b2))
    y3 = x3 @ w2.T + b2
    ref3 = jnp.concatenate([jnp.exp(y3), jnp.exp(-y3)], axis=-1)
    assert out3.shape == (5, 7, 2 * head_dim)
    assert jnp.allclose(out3, ref3, rtol=1e-4, atol=1e-4)

    # D % 128 == 0 path: exp once + exact reciprocal, lane-aligned slice stores.
    D4 = 128
    x4 = _bf16_representable(
        jax.random.normal(jax.random.PRNGKey(5), (2, 64, D4), jnp.float32))
    w4 = _bf16_representable(
        jax.random.normal(jax.random.PRNGKey(6), (D4, D4), jnp.float32) * 0.05)
    b4 = _bf16_representable(
        jax.random.normal(jax.random.PRNGKey(7), (D4,), jnp.float32) * 0.05)
    out4 = jax.block_until_ready(hedgehog_feature_map(x4, w4, b4))
    y4 = x4 @ w4.T + b4
    ref4 = jnp.concatenate([jnp.exp(y4), jnp.exp(-y4)], axis=-1)
    assert out4.shape == (2, 64, 2 * D4)
    assert jnp.allclose(out4, ref4, rtol=1e-4, atol=1e-4)

    print("KERNEL_OK")
</pallas_src>

<mosaic_0001>
module attributes {stable_mosaic.version = 11 : i64} {
  func.func @_hedgehog_fold_kernel(%arg0: i32, %arg1: memref<4x128xf32, #tpu.memory_space<vmem>>, %arg2: memref<128x256xf32, #tpu.memory_space<vmem>>, %arg3: memref<1x256xf32, #tpu.memory_space<vmem>>, %arg4: memref<4x256xf32, #tpu.memory_space<vmem>>) attributes {dimension_semantics = [#tpu.dimension_semantics<parallel>], iteration_bounds = array<i64: 1>, scalar_prefetch = 0 : i64, scratch_operands = 0 : i64, tpu.core_type = #tpu.core_type<tc>, window_params = [{transform_indices = @transform_0, window_bounds = array<i64: 4, 128>}, {pipeline_mode = #tpu.pipeline_mode<synchronous>, transform_indices = @transform_1, window_bounds = array<i64: 128, 256>}, {pipeline_mode = #tpu.pipeline_mode<synchronous>, transform_indices = @transform_2, window_bounds = array<i64: 1, 256>}, {transform_indices = @transform_3, window_bounds = array<i64: 4, 256>}]} {
    %c0 = arith.constant 0 : index
    %c0_0 = arith.constant 0 : index
    %0 = vector.load %arg1[%c0, %c0_0] : memref<4x128xf32, #tpu.memory_space<vmem>>, vector<4x128xf32>
    %c0_1 = arith.constant 0 : index
    %c0_2 = arith.constant 0 : index
    %1 = vector.load %arg2[%c0_1, %c0_2] : memref<128x256xf32, #tpu.memory_space<vmem>>, vector<128x256xf32>
    %cst = arith.constant dense<0.000000e+00> : vector<4x256xf32>
    %2 = tpu.matmul %0, %1, %cst {dimension_numbers = #tpu.dot_dimension_numbers<[1], [0], [0], [1], [0, 0, 1, 1], [], []>} : vector<4x128xf32>, vector<128x256xf32>, vector<4x256xf32> -> vector<4x256xf32>
    %c0_3 = arith.constant 0 : index
    %c0_4 = arith.constant 0 : index
    %3 = vector.load %arg3[%c0_3, %c0_4] : memref<1x256xf32, #tpu.memory_space<vmem>>, vector<1x256xf32>
    %4 = vector.broadcast %3 : vector<1x256xf32> to vector<4x256xf32>
    %5 = arith.addf %2, %4 : vector<4x256xf32>
    %6 = math.exp %5 : vector<4x256xf32>
    %c0_5 = arith.constant 0 : index
    %c0_6 = arith.constant 0 : index
    %7 = vector.load %arg4[%c0_5, %c0_6] : memref<4x256xf32, #tpu.memory_space<vmem>>, vector<4x256xf32>
    tpu.vector_store %arg4[%c0_5, %c0_6], %6 {strides = array<i32>} : memref<4x256xf32, #tpu.memory_space<vmem>>, vector<4x256xf32>,
    return
  }
  func.func @transform_0(%arg0: i32) -> (i32, i32) {
    %c0_i32 = arith.constant 0 : i32
    %c0_i32_0 = arith.constant 0 : i32
    return %arg0, %c0_i32 : i32, i32
  }
  func.func @transform_1(%arg0: i32) -> (i32, i32) {
    %c0_i32 = arith.constant 0 : i32
    %c0_i32_0 = arith.constant 0 : i32
    %c0_i32_1 = arith.constant 0 : i32
    return %c0_i32, %c0_i32_0 : i32, i32
  }
  func.func @transform_2(%arg0: i32) -> (i32, i32) {
    %c0_i32 = arith.constant 0 : i32
    %c0_i32_0 = arith.constant 0 : i32
    %c0_i32_1 = arith.constant 0 : i32
    return %c0_i32, %c0_i32_0 : i32, i32
  }
  func.func @transform_3(%arg0: i32) -> (i32, i32) {
    %c0_i32 = arith.constant 0 : i32
    %c0_i32_0 = arith.constant 0 : i32
    return %arg0, %c0_i32 : i32, i32
  }
}

</mosaic_0001>

<llo_original>
// kernel: tpu_custom_call.1
$region0: #{tpu_custom_call.1}
  #allocation0 [shape = 'u32[]', space=smem, size = 0x4, offset = 0x4, fixed_abs, tag = 'smem constant byte address 0x4 - core index']
  #allocation1 [shape = 'u32[144,128]{1,0:T(1,128)}', space=vmem, size = 0x12000, scoped, tag = 'internal scratch']
  %s0 = inlined_call_operand.hbm [shape: f32[4,128], index: 0, kind: input, shape index: {}]
  %s1 = inlined_call_operand.hbm [shape: f32[128,256], index: 1, kind: input, shape index: {}]
  %s2 = inlined_call_operand.vmem [shape: f32[1,256], index: 2, kind: input, shape index: {}]
  %s3 = inlined_call_operand.hbm [shape: f32[4,256], index: 3, kind: output, shape index: {}]
  %s4 = sld [smem:[#allocation0]]
  $region30: #{tpu_custom_call.1} parent=0
    _
  %s6 = ssub.s32 1, %s4
  %s7 = scalar_select 0, %s6, %s4
  $region1: #{tpu_custom_call.1} parent=0
    #allocation2 [shape = 'u8[2048]{0}', space=vmem, size = 0x800, scoped, tag = 'input window, operand 0, single buffered']
    #allocation3 [shape = 's32[1]{0}', space=sflag, size = 0x4, scoped, tag = 'scoped memory for tpu_custom_call.1']
    #allocation4 [shape = 's32[1]{0}', space=sflag, size = 0x4, scoped, tag = 'scoped memory for tpu_custom_call.1']
    #allocation5 [shape = 'u8[131072]{0}', space=vmem, size = 0x20000, scoped, tag = 'input window, operand 1, single buffered']
    #allocation6 [shape = 's32[1]{0}', space=sflag, size = 0x4, scoped, tag = 'scoped memory for tpu_custom_call.1']
    #allocation7 [shape = 'u8[4096]{0}', space=vmem, size = 0x1000, scoped, tag = 'output window, operand 0, single buffered']
    %8 = vsyncpa [#allocation3], 0
    %9 = vsyncpa [#allocation6], 0
    %10 = vsyncpa [#allocation4], 0
    // Predicated region
    $region2: #{tpu_custom_call.1} parent=1 // pred_check
      _
    $region3: #{tpu_custom_call.1} parent=1 // pred_check_branch
      %12 = sbr.rel (0) target = $region5
    $region4: #{tpu_custom_call.1} parent=1 // pred_region
      %s14 = ssub.s32 64, 64
      %15 = vsyncadd [#allocation3], %s14
      %s17 = sshll.u32 [#allocation2], 4
      %s18 = int_to_ptr.vmem [resolvable:$true] %s17
      %20 = dma.hbm_to_vmem [thread:$0]  %s0, 64, %s18, [#allocation3]
    $region5: #{tpu_custom_call.1} parent=1 // pred_fallthru
      _
    // Predicated region
    $region6: #{tpu_custom_call.1} parent=1 // pred_check
      _
    $region7: #{tpu_custom_call.1} parent=1 // pred_check_branch
      %22 = sbr.rel (0) target = $region9
    $region8: #{tpu_custom_call.1} parent=1 // pred_region
      %s24 = ssub.s32 4096, 4096
      %25 = vsyncadd [#allocation6], %s24
      %s26 = sshll.u32 [#allocation5], 4
      %s27 = int_to_ptr.vmem [resolvable:$true] %s26
      %32 = dma.hbm_to_vmem [thread:$0]  %s1, 4096, %s27, [#allocation6], 256, 256, 16
    $region9: #{tpu_custom_call.1} parent=1 // pred_fallthru
      _
    // Predicated region
    $region10: #{tpu_custom_call.1} parent=1 // pred_check
      _
    $region11: #{tpu_custom_call.1} parent=1 // pred_check_branch
      %34 = sbr.rel (0) target = $region13
    $region12: #{tpu_custom_call.1} parent=1 // pred_region
      _
    $region13: #{tpu_custom_call.1} parent=1 // pred_fallthru
      _
    // Predicated region
    $region14: #{tpu_custom_call.1} parent=1 // pred_check
      _
    $region15: #{tpu_custom_call.1} parent=1 // pred_check_branch
      %36 = sbr.rel (0) target = $region17
    $region16: #{tpu_custom_call.1} parent=1 // pred_region
      %37 = dma.done [#allocation3], 64
    $region17: #{tpu_custom_call.1} parent=1 // pred_fallthru
      _
    // Predicated region
    $region18: #{tpu_custom_call.1} parent=1 // pred_check
      _
    $region19: #{tpu_custom_call.1} parent=1 // pred_check_branch
      %39 = sbr.rel (0) target = $region21
    $region20: #{tpu_custom_call.1} parent=1 // pred_region
      %40 = dma.done [#allocation6], 4096
    $region21: #{tpu_custom_call.1} parent=1 // pred_fallthru
      _
    %v41 = vld [vmem:[#allocation2] sm:$0xf]
    %v42 = vld [vmem:[#allocation5] sm:$0xff]
    %v43 = vld [vmem:[#allocation5 + $0x8] sm:$0xff]
    %v44 = vld [vmem:[#allocation5 + $0x10] sm:$0xff]
    %v45 = vld [vmem:[#allocation5 + $0x18] sm:$0xff]
    %v46 = vld [vmem:[#allocation5 + $0x20] sm:$0xff]
    %v47 = vld [vmem:[#allocation5 + $0x28] sm:$0xff]
    %v48 = vld [vmem:[#allocation5 + $0x30] sm:$0xff]
    %v49 = vld [vmem:[#allocation5 + $0x38] sm:$0xff]
    %v50 = vld [vmem:[#allocation5 + $0x40] sm:$0xff]
    %v51 = vld [vmem:[#allocation5 + $0x48] sm:$0xff]
    %v52 = vld [vmem:[#allocation5 + $0x50] sm:$0xff]
    %v53 = vld [vmem:[#allocation5 + $0x58] sm:$0xff]
    %v54 = vld [vmem:[#allocation5 + $0x60] sm:$0xff]
    %v55 = vld [vmem:[#allocation5 + $0x68] sm:$0xff]
    %v56 = vld [vmem:[#allocation5 + $0x70] sm:$0xff]
    %v57 = vld [vmem:[#allocation5 + $0x78] sm:$0xff]
    %v58 = vld [vmem:[#allocation5 + $0x80] sm:$0xff]
    %v59 = vld [vmem:[#allocation5 + $0x88] sm:$0xff]
    %v60 = vld [vmem:[#allocation5 + $0x90] sm:$0xff]
    %v61 = vld [vmem:[#allocation5 + $0x98] sm:$0xff]
    %v62 = vld [vmem:[#allocation5 + $0xa0] sm:$0xff]
    %v63 = vld [vmem:[#allocation5 + $0xa8] sm:$0xff]
    %v64 = vld [vmem:[#allocation5 + $0xb0] sm:$0xff]
    %v65 = vld [vmem:[#allocation5 + $0xb8] sm:$0xff]
    %v66 = vld [vmem:[#allocation5 + $0xc0] sm:$0xff]
    %v67 = vld [vmem:[#allocation5 + $0xc8] sm:$0xff]
    %v68 = vld [vmem:[#allocation5 + $0xd0] sm:$0xff]
    %v69 = vld [vmem:[#allocation5 + $0xd8] sm:$0xff]
    %v70 = vld [vmem:[#allocation5 + $0xe0] sm:$0xff]
    %v71 = vld [vmem:[#allocation5 + $0xe8] sm:$0xff]
    %v72 = vld [vmem:[#allocation5 + $0xf0] sm:$0xff]
    %v73 = vld [vmem:[#allocation5 + $0xf8] sm:$0xff]
    %v74 = vld [vmem:[%s2] sm:$0x3]
    %v76 = vlaneseq
    %v77 = vshrl.u32 %v76, 7
    %v78 = vsub.s32 0, %v77
    %v79 = vrot.slane %v74, %v78
    %v80 = vlaneseq
    %v81 = vshrl.u32 %v80, 7
    %v82 = vsub.s32 1, %v81
    %v83 = vrot.slane %v74, %v82
    %86 = vmatprep.subr.mxu0 %v73
    %87 = vmatpush1.msra.mxu0 %v72
    %88 = vmatprep.subr.mxu0 %v71
    %89 = vmatpush1.msra.mxu0 %v70
    %90 = vmatprep.subr.mxu0 %v69
    %91 = vmatpush1.msra.mxu0 %v68
    %92 = vmatprep.subr.mxu0 %v67
    %93 = vmatpush1.msra.mxu0 %v66
    %94 = vmatprep.subr.mxu0 %v65
    %95 = vmatpush1.msra.mxu0 %v64
    %96 = vmatprep.subr.mxu0 %v63
    %97 = vmatpush1.msra.mxu0 %v62
    %98 = vmatprep.subr.mxu0 %v61
    %99 = vmatpush1.msra.mxu0 %v60
    %100 = vmatprep.subr.mxu0 %v59
    %101 = vmatpush1.msra.mxu0 %v58
    %102 = vmatprep.subr.mxu0 %v57
    %103 = vmatpush1.msra.mxu0 %v56
    %104 = vmatprep.subr.mxu0 %v55
    %105 = vmatpush1.msra.mxu0 %v54
    %106 = vmatprep.subr.mxu0 %v53
    %107 = vmatpush1.msra.mxu0 %v52
    %108 = vmatprep.subr.mxu0 %v51
    %109 = vmatpush1.msra.mxu0 %v50
    %110 = vmatprep.subr.mxu0 %v49
    %111 = vmatpush1.msra.mxu0 %v48
    %112 = vmatprep.subr.mxu0 %v47
    %113 = vmatpush1.msra.mxu0 %v46
    %114 = vmatprep.subr.mxu0 %v45
    %115 = vmatpush1.msra.mxu0 %v44
    %116 = vmatprep.subr.mxu0 %v43
    %117 = vmatpush1.msra.mxu0 %v42
    %118 = vmatprep.subr.mxu0 0.0
    %119 = vmatpush2.msra.mxu0 0.0
    %120 = vmatprep.subr.mxu0 0.0
    %121 = vmatpush2.msra.mxu0 0.0
    %122 = vmatprep.subr.mxu0 0.0
    %123 = vmatpush2.msra.mxu0 0.0
    %124 = vmatprep.subr.mxu0 0.0
    %125 = vmatpush2.msra.mxu0 0.0
    %126 = vmatprep.subr.mxu0 0.0
    %127 = vmatpush2.msra.mxu0 0.0
    %128 = vmatprep.subr.mxu0 0.0
    %129 = vmatpush2.msra.mxu0 0.0
    %130 = vmatprep.subr.mxu0 0.0
    %131 = vmatpush2.msra.mxu0 0.0
    %132 = vmatprep.subr.mxu0 0.0
    %133 = vmatpush2.msra.mxu0 0.0
    %134 = vmatprep.subr.mxu0 0.0
    %135 = vmatpush2.msra.mxu0 0.0
    %136 = vmatprep.subr.mxu0 0.0
    %137 = vmatpush2.msra.mxu0 0.0
    %138 = vmatprep.subr.mxu0 0.0
    %139 = vmatpush2.msra.mxu0 0.0
    %140 = vmatprep.subr.mxu0 0.0
    %141 = vmatpush2.msra.mxu0 0.0
    %142 = vmatprep.subr.mxu0 0.0
    %143 = vmatpush2.msra.mxu0 0.0
    %144 = vmatprep.subr.mxu0 0.0
    %145 = vmatpush2.msra.mxu0 0.0
    %146 = vmatprep.subr.mxu0 0.0
    %147 = vmatpush2.msra.mxu0 0.0
    %148 = vmatprep.subr.mxu0 0.0
    %149 = vmatpush2.msra.mxu0 0.0
    %150 = vmatprep.mubr.f32.mxu0 0.0
    %151 = vmatmul.mubr.f32.gmra.mxu0 %v41
    %v152 = vpop.f32.mrf.mxu0
    %v153 = vadd.f32 %v79, %v152
    %v154 = vpop.f32.mrf.mxu0
    %v155 = vadd.f32 %v83, %v154
    %156 = vdwg.mxu0
    %v157 = vmul.f32 %v153, 1.442695
    %v158 = vpow.pop %v157
    %v159 = vmul.f32 %v155, 1.442695
    %v160 = vpow.pop %v159
    %v163 = vcombine.low %v158, %v160
    %165 = vst [vmem:[#allocation7] sm:$0xff] %v163
    // Predicated region
    $region22: #{tpu_custom_call.1} parent=1 // pred_check
      _
    $region23: #{tpu_custom_call.1} parent=1 // pred_check_branch
      %167 = sbr.rel (0) target = $region25
    $region24: #{tpu_custom_call.1} parent=1 // pred_region
      %s169 = ssub.s32 128, 128
      %170 = vsyncadd [#allocation4], %s169
      %s172 = sshll.u32 [#allocation7], 4
      %s173 = int_to_ptr.vmem [resolvable:$true] %s172
      %175 = dma.vmem_to_hbm [thread:$0]  %s173, 128, %s3, [#allocation4]
    $region25: #{tpu_custom_call.1} parent=1 // pred_fallthru
      _
    // Predicated region
    $region26: #{tpu_custom_call.1} parent=1 // pred_check
      _
    $region27: #{tpu_custom_call.1} parent=1 // pred_check_branch
      %177 = sbr.rel (0) target = $region29
    $region28: #{tpu_custom_call.1} parent=1 // pred_region
      %178 = dma.done [#allocation4], 128
    $region29: #{tpu_custom_call.1} parent=1 // pred_fallthru
      _
    %179 = vsyncpa [#allocation3], 1
    %180 = vsyncpa [#allocation6], 1
    %181 = vsyncpa [#allocation4], 1

</llo_original>
